<compile_context>
chip_gen: v7x
topology: tpu7x:2x2x1
jax: 0.10.0
libtpu: 0.0.40
codegen_flags: <defaults>
</compile_context>

<pallas_src>
import functools

import jax
import jax.numpy as jnp
from jax import lax
from jax.experimental import pallas as pl
from jax.experimental.pallas import tpu as pltpu


_ABS_MAX_BATCH_TILE = 8192   # sanity cap even when the VMEM budget allows more
_OUT_TILE_CAP = 1024         # centroid-column slab width (multiple of 128)
_VMEM_FRACTION = 0.7         # fraction of physical VMEM used as the scoped limit


def _round_up(x, m):
    return ((x + m - 1) // m) * m


def _cdiv(a, b):
    return -(-a // b)


def _vmem_capacity_bytes():
    """Physical VMEM per TensorCore; conservative fallback if query fails."""
    try:
        info = pltpu.get_tpu_info()
        cap = getattr(info, "vmem_capacity_bytes", None)
        if cap:
            return int(cap)
    except Exception:
        pass
    return 64 * 1024 * 1024  # v7x per-TC VMEM (smallest of v5e/v6e/v7x)


def _mlp_bottleneck_kernel(x_ref, w1f_ref, shift1_ref, w2t_ref, b2_ref, wct_ref,
                           sim_ref, proj_ref, pn_ref):
    # Grid: (batch tiles, centroid-column tiles).  The projection (layers 1-2 +
    # L2 normalize) is computed once per batch tile (j == 0), cached in the pn
    # scratch, and reused for every centroid-column slab.
    @pl.when(pl.program_id(1) == 0)
    def _():
        # Linear-1 with BN(eval) + bias pre-folded into (w1f, shift1), then ReLU.
        h = jnp.dot(x_ref[...], w1f_ref[...], preferred_element_type=jnp.float32)
        h = jnp.maximum(h + shift1_ref[...], 0.0)
        # Linear-2 -> bottleneck projection.
        p = jnp.dot(h.astype(w2t_ref.dtype), w2t_ref[...],
                    preferred_element_type=jnp.float32) + b2_ref[...]
        # F.normalize(p, p=2, dim=-1): rsqrt on the (tb, 1) squared-norm column
        # (EUP slot); clamp on sumsq matches clamp_min(norm, 1e-12) up to rounding.
        sumsq = jnp.sum(p * p, axis=-1, keepdims=True)
        pn = p * lax.rsqrt(jnp.maximum(sumsq, 1e-24))
        pn_ref[...] = pn
        # proj's output block has a constant column index: write it once here;
        # Pallas writes it back to HBM when the batch tile advances (the
        # writeback automatically overlaps the next grid step).
        proj_ref[...] = pn.astype(proj_ref.dtype)

    # CentroidLayer (weight-norm rows with g=1, no bias) for this column slab.
    sim_ref[...] = jnp.dot(pn_ref[...].astype(wct_ref.dtype), wct_ref[...],
                           preferred_element_type=jnp.float32).astype(sim_ref.dtype)


@functools.partial(jax.jit, static_argnames=("out_dtype",))
def mlp_bottleneck_classifier(x, w1f, shift1, w2t, b2, wct, *, out_dtype=jnp.float32):
    B, input_dim = x.shape
    hidden_pad = w1f.shape[1]
    bottleneck_dim = w2t.shape[1]
    output_dim = wct.shape[1]

    # Keep the MXU on the narrow path: x must match the (possibly bf16) weights.
    x = x.astype(w1f.dtype)
    in_db = jnp.dtype(w1f.dtype).itemsize
    out_db = jnp.dtype(out_dtype).itemsize

    # ---- centroid-column tiling: bound wct / sim slabs in VMEM ----
    if output_dim <= _OUT_TILE_CAP:
        out_tile = output_dim
        out_pad = output_dim
    else:
        out_tile = _OUT_TILE_CAP
        out_pad = _round_up(output_dim, out_tile)
        if out_pad != output_dim:
            # Rare path (only for awkward large output_dim); padded columns are
            # sliced off the result below.
            wct = jnp.pad(wct, ((0, 0), (0, out_pad - output_dim)))
    no = out_pad // out_tile

    # ---- batch tile from an explicit per-generation VMEM budget ----
    vmem_limit = int(_vmem_capacity_bytes() * _VMEM_FRACTION)
    in_lanes = _round_up(input_dim, 128)        # x block is lane-padded in VMEM
    bneck_lanes = _round_up(bottleneck_dim, 128)
    # Weights/biases are grid-resident but conservatively counted double-buffered.
    weight_bytes = 2 * in_db * (in_lanes * hidden_pad + hidden_pad
                                + hidden_pad * bneck_lanes + bneck_lanes
                                + bneck_lanes * out_tile)
    per_row_bytes = (2 * in_db * in_lanes           # x (double-buffered, lane-padded)
                     + 2 * out_db * out_tile        # sim (double-buffered)
                     + 2 * out_db * bneck_lanes     # proj (double-buffered)
                     + 4 * bneck_lanes              # pn scratch (f32)
                     + 4 * (hidden_pad + bneck_lanes))  # h / p f32 temps
    budget = vmem_limit - weight_bytes - (2 << 20)
    tb_cap = max(8, min(_ABS_MAX_BATCH_TILE, (budget // per_row_bytes) // 8 * 8))

    b8 = _round_up(B, 8)
    # Guarantee >=2 batch steps when possible so a second TensorCore (v7x
    # megacore, "parallel" batch axis) always has work.
    n_min = 2 if b8 >= 16 else 1
    nb = max(_cdiv(b8, tb_cap), n_min)
    if b8 % nb == 0 and (b8 // nb) % 8 == 0:
        tb = b8 // nb                         # exact split: no extra padding
    else:
        tb = _round_up(_cdiv(b8, nb), 8)      # overpad <= 8*nb rows (not a full tile)
    b_pad = nb * tb
    if b_pad != B:
        x = jnp.pad(x, ((0, b_pad - B), (0, 0)))

    flops = 2 * b_pad * (input_dim * hidden_pad + hidden_pad * bottleneck_dim
                         + bottleneck_dim * out_pad)
    bytes_accessed = (in_db * (b_pad * input_dim + w1f.size + shift1.size
                               + w2t.size + b2.size + nb * wct.size)
                      + out_db * b_pad * (out_pad + bottleneck_dim))

    def const_spec(a):
        return pl.BlockSpec(a.shape, lambda i, j: (0, 0))

    sim, proj = pl.pallas_call(
        _mlp_bottleneck_kernel,
        out_shape=(
            jax.ShapeDtypeStruct((b_pad, out_pad), out_dtype),
            jax.ShapeDtypeStruct((b_pad, bottleneck_dim), out_dtype),
        ),
        grid=(nb, no),
        in_specs=[
            pl.BlockSpec((tb, input_dim), lambda i, j: (i, 0)),     # x: streamed
            const_spec(w1f),                                        # resident weights
            const_spec(shift1),
            const_spec(w2t),
            const_spec(b2),
            pl.BlockSpec((bottleneck_dim, out_tile), lambda i, j: (0, j)),
        ],
        out_specs=(
            pl.BlockSpec((tb, out_tile), lambda i, j: (i, j)),
            pl.BlockSpec((tb, bottleneck_dim), lambda i, j: (i, 0)),
        ),
        scratch_shapes=[pltpu.VMEM((tb, bottleneck_dim), jnp.float32)],
        compiler_params=pltpu.CompilerParams(
            dimension_semantics=("parallel", "arbitrary"),
            vmem_limit_bytes=vmem_limit,
        ),
        cost_estimate=pl.CostEstimate(
            flops=int(flops),
            transcendentals=int(b_pad),
            bytes_accessed=int(bytes_accessed),
        ),
    )(x, w1f, shift1, w2t, b2, wct)

    return sim[:B, :output_dim], proj[:B]


def make_params(key, input_dim, hidden_dim, bottleneck_dim, output_dim,
                hidden_pad_multiple=128, dtype=jnp.float32):
    """Deterministic parameter construction mirroring the module's __init__.

    Returns both the raw (PyTorch-equivalent) parameters for the pure-JAX
    reference and the fused/padded parameters consumed by the kernel.
    """
    k1, k2, k3 = jax.random.split(key, 3)

    def trunc_normal(k, shape, std=0.02):
        return std * jax.random.truncated_normal(k, -2.0, 2.0, shape, jnp.float32)

    # projector Linear 1: weight (hidden, input), bias 0
    w1 = trunc_normal(k1, (hidden_dim, input_dim))
    b1 = jnp.zeros((hidden_dim,), jnp.float32)

    # BatchNorm1d(hidden_dim), eval mode, default init (gamma=1, beta=0,
    # running_mean=0, running_var=1, eps=1e-5) -> per-feature scale/shift.
    gamma = jnp.ones((hidden_dim,), jnp.float32)
    beta = jnp.zeros((hidden_dim,), jnp.float32)
    running_mean = jnp.zeros((hidden_dim,), jnp.float32)
    running_var = jnp.ones((hidden_dim,), jnp.float32)
    eps = 1e-5
    bn_scale = gamma / jnp.sqrt(running_var + eps)
    bn_shift = beta - running_mean * bn_scale

    # projector Linear 2: weight (bottleneck, hidden), bias 0
    w2 = trunc_normal(k2, (bottleneck_dim, hidden_dim))
    b2 = jnp.zeros((1, bottleneck_dim), jnp.float32)

    # centroid layer: weight_norm(Linear(bottleneck, output, bias=False)),
    # weight_g = 1  =>  effective weight = v / ||v||_row
    v = trunc_normal(k3, (output_dim, bottleneck_dim))
    v_norm = jnp.sqrt(jnp.sum(v * v, axis=1, keepdims=True))
    wc = v / jnp.maximum(v_norm, 1e-12)

    raw = dict(w1=w1, b1=b1, bn_scale=bn_scale, bn_shift=bn_shift,
               w2=w2, b2=b2, wc=wc)

    # ---- kernel params: fold BN(eval)+b1 into Linear-1, pad hidden dim ----
    #   relu(bn(x @ W1.T + b1)) == relu(x @ (W1.T * s) + (b1*s + t))
    w1f = w1.T * bn_scale[None, :]
    shift1 = (b1 * bn_scale + bn_shift)[None, :]
    w2t = w2.T

    # Zero-pad hidden to a lane-dense multiple of 128: padded columns give
    # h = relu(0) = 0 and the matching zero rows of w2t contribute nothing,
    # so the math is exactly unchanged.
    h_pad = _round_up(hidden_dim, hidden_pad_multiple)
    if h_pad != hidden_dim:
        w1f = jnp.pad(w1f, ((0, 0), (0, h_pad - hidden_dim)))
        shift1 = jnp.pad(shift1, ((0, 0), (0, h_pad - hidden_dim)))
        w2t = jnp.pad(w2t, ((0, h_pad - hidden_dim), (0, 0)))

    kernel = dict(
        w1f=w1f.astype(dtype), shift1=shift1.astype(dtype),
        w2t=w2t.astype(dtype), b2=b2.astype(dtype), wct=wc.T.astype(dtype),
    )
    return raw, kernel


def reference_jax(x, p):
    """Pure-JAX reference mirroring the PyTorch module (eval mode)."""
    h = x @ p["w1"].T + p["b1"][None, :]
    h = h * p["bn_scale"][None, :] + p["bn_shift"][None, :]
    h = jnp.maximum(h, 0.0)
    proj = h @ p["w2"].T + p["b2"]
    n = jnp.sqrt(jnp.sum(proj * proj, axis=-1, keepdims=True))
    pn = proj / jnp.maximum(n, 1e-12)
    sim = pn @ p["wc"].T
    return sim, pn


if __name__ == "__main__":
    key = jax.random.PRNGKey(0)
    kx, kx2, kp = jax.random.split(key, 3)

    input_dim = 32
    hidden_dim = 64
    bottleneck_dim = 256
    output_dim = 128

    raw, kern = make_params(kp, input_dim, hidden_dim, bottleneck_dim, output_dim)

    # ---- f32 path: batch already a multiple of 8 ----
    batch = 8
    x = jax.random.normal(kx, (batch, input_dim), jnp.float32)
    sim, proj = mlp_bottleneck_classifier(
        x, kern["w1f"], kern["shift1"], kern["w2t"], kern["b2"], kern["wct"])
    jax.block_until_ready((sim, proj))

    sim_ref, proj_ref = reference_jax(x, raw)
    assert sim.shape == (batch, output_dim)
    assert proj.shape == (batch, bottleneck_dim)
    assert jnp.allclose(sim, sim_ref, atol=1e-5, rtol=1e-5)
    assert jnp.allclose(proj, proj_ref, atol=1e-5, rtol=1e-5)

    # ---- f32 path: ragged batch exercises the minimal (to multiple of 8) padding ----
    batch2 = 13
    x2 = jax.random.normal(kx2, (batch2, input_dim), jnp.float32)
    sim2, proj2 = mlp_bottleneck_classifier(
        x2, kern["w1f"], kern["shift1"], kern["w2t"], kern["b2"], kern["wct"])
    jax.block_until_ready((sim2, proj2))
    sim2_ref, proj2_ref = reference_jax(x2, raw)
    assert sim2.shape == (batch2, output_dim)
    assert proj2.shape == (batch2, bottleneck_dim)
    assert jnp.allclose(sim2, sim2_ref, atol=1e-5, rtol=1e-5)
    assert jnp.allclose(proj2, proj2_ref, atol=1e-5, rtol=1e-5)

    # ---- bf16 path: bf16 weights + x (f32 accumulation) and bf16 outputs ----
    kern16 = {k: v.astype(jnp.bfloat16) for k, v in kern.items()}
    sim3, proj3 = mlp_bottleneck_classifier(
        x, kern16["w1f"], kern16["shift1"], kern16["w2t"], kern16["b2"],
        kern16["wct"], out_dtype=jnp.bfloat16)
    jax.block_until_ready((sim3, proj3))
    assert sim3.dtype == jnp.bfloat16 and proj3.dtype == jnp.bfloat16
    assert jnp.allclose(sim3.astype(jnp.float32), sim_ref, atol=3e-2, rtol=3e-2)
    assert jnp.allclose(proj3.astype(jnp.float32), proj_ref, atol=3e-2, rtol=3e-2)

    print("KERNEL_OK")
</pallas_src>

<mosaic_0001>
module attributes {stable_mosaic.version = 11 : i64} {
  func.func @_mlp_bottleneck_kernel(%arg0: i32, %arg1: i32, %arg2: memref<8x32xf32, #tpu.memory_space<vmem>>, %arg3: memref<32x128xf32, #tpu.memory_space<vmem>>, %arg4: memref<1x128xf32, #tpu.memory_space<vmem>>, %arg5: memref<128x256xf32, #tpu.memory_space<vmem>>, %arg6: memref<1x256xf32, #tpu.memory_space<vmem>>, %arg7: memref<256x128xf32, #tpu.memory_space<vmem>>, %arg8: memref<8x128xf32, #tpu.memory_space<vmem>>, %arg9: memref<8x256xf32, #tpu.memory_space<vmem>>, %arg10: memref<8x256xf32, #tpu.memory_space<vmem>>) attributes {dimension_semantics = [#tpu.dimension_semantics<parallel>, #tpu.dimension_semantics<arbitrary>], iteration_bounds = array<i64: 1, 1>, scalar_prefetch = 0 : i64, scratch_operands = 1 : i64, tpu.core_type = #tpu.core_type<tc>, window_params = [{transform_indices = @transform_0, window_bounds = array<i64: 8, 32>}, {pipeline_mode = #tpu.pipeline_mode<synchronous>, transform_indices = @transform_1, window_bounds = array<i64: 32, 128>}, {pipeline_mode = #tpu.pipeline_mode<synchronous>, transform_indices = @transform_2, window_bounds = array<i64: 1, 128>}, {pipeline_mode = #tpu.pipeline_mode<synchronous>, transform_indices = @transform_3, window_bounds = array<i64: 128, 256>}, {pipeline_mode = #tpu.pipeline_mode<synchronous>, transform_indices = @transform_4, window_bounds = array<i64: 1, 256>}, {transform_indices = @transform_5, window_bounds = array<i64: 256, 128>}, {transform_indices = @transform_6, window_bounds = array<i64: 8, 128>}, {transform_indices = @transform_7, window_bounds = array<i64: 8, 256>}]} {
    %c0_i32 = arith.constant 0 : i32
    %0 = arith.cmpi eq, %arg1, %c0_i32 : i32
    %1 = arith.extui %0 : i1 to i32
    %c0_i32_0 = arith.constant 0 : i32
    %2 = arith.cmpi ne, %1, %c0_i32_0 : i32
    scf.if %2 {
      %c0_6 = arith.constant 0 : index
      %c0_7 = arith.constant 0 : index
      %7 = vector.load %arg2[%c0_6, %c0_7] : memref<8x32xf32, #tpu.memory_space<vmem>>, vector<8x32xf32>
      %c0_8 = arith.constant 0 : index
      %c0_9 = arith.constant 0 : index
      %8 = vector.load %arg3[%c0_8, %c0_9] : memref<32x128xf32, #tpu.memory_space<vmem>>, vector<32x128xf32>
      %cst_10 = arith.constant dense<0.000000e+00> : vector<8x128xf32>
      %9 = tpu.matmul %7, %8, %cst_10 {dimension_numbers = #tpu.dot_dimension_numbers<[1], [0], [0], [1], [0, 0, 1, 1], [], []>} : vector<8x32xf32>, vector<32x128xf32>, vector<8x128xf32> -> vector<8x128xf32>
      %c0_11 = arith.constant 0 : index
      %c0_12 = arith.constant 0 : index
      %10 = vector.load %arg4[%c0_11, %c0_12] : memref<1x128xf32, #tpu.memory_space<vmem>>, vector<1x128xf32>
      %11 = vector.broadcast %10 : vector<1x128xf32> to vector<8x128xf32>
      %12 = arith.addf %9, %11 : vector<8x128xf32>
      %cst_13 = arith.constant 0.000000e+00 : f32
      %13 = vector.broadcast %cst_13 : f32 to vector<8x128xf32>
      %14 = arith.maximumf %12, %13 : vector<8x128xf32>
      %c0_14 = arith.constant 0 : index
      %c0_15 = arith.constant 0 : index
      %15 = vector.load %arg5[%c0_14, %c0_15] : memref<128x256xf32, #tpu.memory_space<vmem>>, vector<128x256xf32>
      %cst_16 = arith.constant dense<0.000000e+00> : vector<8x256xf32>
      %16 = tpu.matmul %14, %15, %cst_16 {dimension_numbers = #tpu.dot_dimension_numbers<[1], [0], [0], [1], [0, 0, 1, 1], [], []>} : vector<8x128xf32>, vector<128x256xf32>, vector<8x256xf32> -> vector<8x256xf32>
      %c0_17 = arith.constant 0 : index
      %c0_18 = arith.constant 0 : index
      %17 = vector.load %arg6[%c0_17, %c0_18] : memref<1x256xf32, #tpu.memory_space<vmem>>, vector<1x256xf32>
      %18 = vector.broadcast %17 : vector<1x256xf32> to vector<8x256xf32>
      %19 = arith.addf %16, %18 : vector<8x256xf32>
      %20 = arith.mulf %19, %19 : vector<8x256xf32>
      %cst_19 = arith.constant dense<0.000000e+00> : vector<8xf32>
      %21 = vector.multi_reduction <add>, %20, %cst_19 [1] : vector<8x256xf32> to vector<8xf32>
      %22 = vector.shape_cast %21 : vector<8xf32> to vector<8x1xf32>
      %cst_20 = arith.constant 1.000000e-24 : f32
      %23 = vector.broadcast %cst_20 : f32 to vector<8x1xf32>
      %24 = arith.maximumf %22, %23 : vector<8x1xf32>
      %25 = math.rsqrt %24 : vector<8x1xf32>
      %26 = vector.broadcast %25 : vector<8x1xf32> to vector<8x256xf32>
      %27 = arith.mulf %19, %26 : vector<8x256xf32>
      %c0_21 = arith.constant 0 : index
      %c0_22 = arith.constant 0 : index
      %28 = vector.load %arg10[%c0_21, %c0_22] : memref<8x256xf32, #tpu.memory_space<vmem>>, vector<8x256xf32>
      tpu.vector_store %arg10[%c0_21, %c0_22], %27 {strides = array<i32>} : memref<8x256xf32, #tpu.memory_space<vmem>>, vector<8x256xf32>,
      %c0_23 = arith.constant 0 : index
      %c0_24 = arith.constant 0 : index
      %29 = vector.load %arg9[%c0_23, %c0_24] : memref<8x256xf32, #tpu.memory_space<vmem>>, vector<8x256xf32>
      tpu.vector_store %arg9[%c0_23, %c0_24], %27 {strides = array<i32>} : memref<8x256xf32, #tpu.memory_space<vmem>>, vector<8x256xf32>,
    } else {
    }
    %c0 = arith.constant 0 : index
    %c0_1 = arith.constant 0 : index
    %3 = vector.load %arg10[%c0, %c0_1] : memref<8x256xf32, #tpu.memory_space<vmem>>, vector<8x256xf32>
    %c0_2 = arith.constant 0 : index
    %c0_3 = arith.constant 0 : index
    %4 = vector.load %arg7[%c0_2, %c0_3] : memref<256x128xf32, #tpu.memory_space<vmem>>, vector<256x128xf32>
    %cst = arith.constant dense<0.000000e+00> : vector<8x128xf32>
    %5 = tpu.matmul %3, %4, %cst {dimension_numbers = #tpu.dot_dimension_numbers<[1], [0], [0], [1], [0, 0, 1, 1], [], []>} : vector<8x256xf32>, vector<256x128xf32>, vector<8x128xf32> -> vector<8x128xf32>
    %c0_4 = arith.constant 0 : index
    %c0_5 = arith.constant 0 : index
    %6 = vector.load %arg8[%c0_4, %c0_5] : memref<8x128xf32, #tpu.memory_space<vmem>>, vector<8x128xf32>
    tpu.vector_store %arg8[%c0_4, %c0_5], %5 {strides = array<i32>} : memref<8x128xf32, #tpu.memory_space<vmem>>, vector<8x128xf32>,
    return
  }
  func.func @transform_0(%arg0: i32, %arg1: i32) -> (i32, i32) {
    %c0_i32 = arith.constant 0 : i32
    %c0_i32_0 = arith.constant 0 : i32
    return %arg0, %c0_i32 : i32, i32
  }
  func.func @transform_1(%arg0: i32, %arg1: i32) -> (i32, i32) {
    %c0_i32 = arith.constant 0 : i32
    %c0_i32_0 = arith.constant 0 : i32
    %c0_i32_1 = arith.constant 0 : i32
    return %c0_i32, %c0_i32_0 : i32, i32
  }
  func.func @transform_2(%arg0: i32, %arg1: i32) -> (i32, i32) {
    %c0_i32 = arith.constant 0 : i32
    %c0_i32_0 = arith.constant 0 : i32
    %c0_i32_1 = arith.constant 0 : i32
    return %c0_i32, %c0_i32_0 : i32, i32
  }
  func.func @transform_3(%arg0: i32, %arg1: i32) -> (i32, i32) {
    %c0_i32 = arith.constant 0 : i32
    %c0_i32_0 = arith.constant 0 : i32
    %c0_i32_1 = arith.constant 0 : i32
    return %c0_i32, %c0_i32_0 : i32, i32
  }
  func.func @transform_4(%arg0: i32, %arg1: i32) -> (i32, i32) {
    %c0_i32 = arith.constant 0 : i32
    %c0_i32_0 = arith.constant 0 : i32
    %c0_i32_1 = arith.constant 0 : i32
    return %c0_i32, %c0_i32_0 : i32, i32
  }
  func.func @transform_5(%arg0: i32, %arg1: i32) -> (i32, i32) {
    %c0_i32 = arith.constant 0 : i32
    %c0_i32_0 = arith.constant 0 : i32
    return %c0_i32, %arg1 : i32, i32
  }
  func.func @transform_6(%arg0: i32, %arg1: i32) -> (i32, i32) {
    %c0_i32 = arith.constant 0 : i32
    return %arg0, %arg1 : i32, i32
  }
  func.func @transform_7(%arg0: i32, %arg1: i32) -> (i32, i32) {
    %c0_i32 = arith.constant 0 : i32
    %c0_i32_0 = arith.constant 0 : i32
    return %arg0, %c0_i32 : i32, i32
  }
}

</mosaic_0001>

<llo_original>
// kernel: mlp_bottleneck_classifier.1
$region0: #{mlp_bottleneck_classifier.1}
  #allocation0 [shape = 'u32[]', space=smem, size = 0x4, offset = 0x4, fixed_abs, tag = 'smem constant byte address 0x4 - core index']
  #allocation1 [shape = 'u32[144,128]{1,0:T(1,128)}', space=vmem, size = 0x12000, scoped, tag = 'internal scratch']
  #allocation2 [shape = 'f32[8,256]{1,0:T(8,128)}', space=vmem, size = 0x2000, scoped, tag = 'scratch operand']
  %s0 = inlined_call_operand.hbm [shape: f32[8,32], index: 0, kind: input, shape index: {}]
  %s1 = inlined_call_operand.hbm [shape: f32[32,128], index: 1, kind: input, shape index: {}]
  %s2 = inlined_call_operand.vmem [shape: f32[1,128], index: 2, kind: input, shape index: {}]
  %s3 = inlined_call_operand.hbm [shape: f32[128,256], index: 3, kind: input, shape index: {}]
  %s4 = inlined_call_operand.vmem [shape: f32[1,256], index: 4, kind: input, shape index: {}]
  %s5 = inlined_call_operand.hbm [shape: f32[256,128], index: 5, kind: input, shape index: {}]
  %s6 = inlined_call_operand.hbm [shape: f32[8,128], index: 6, kind: output, shape index: {0}]
  %s7 = inlined_call_operand.hbm [shape: f32[8,256], index: 7, kind: output, shape index: {1}]
  %8 = xla_tuple %s6, %s7
  %s9 = sld [smem:[#allocation0]]
  $region62: #{mlp_bottleneck_classifier.1} parent=0
    _
  %s11 = ssub.s32 1, %s9
  %s12 = scalar_select 0, %s11, %s9
  $region1: #{mlp_bottleneck_classifier.1} parent=0
    #allocation3 [shape = 'u8[4096]{0}', space=vmem, size = 0x1000, scoped, tag = 'input window, operand 0, single buffered']
    #allocation4 [shape = 's32[1]{0}', space=sflag, size = 0x4, scoped, tag = 'scoped memory for mlp_bottleneck_classifier.1']
    #allocation5 [shape = 's32[1]{0}', space=sflag, size = 0x4, scoped, tag = 'scoped memory for mlp_bottleneck_classifier.1']
    #allocation6 [shape = 'u8[16384]{0}', space=vmem, size = 0x4000, scoped, tag = 'input window, operand 1, single buffered']
    #allocation7 [shape = 's32[1]{0}', space=sflag, size = 0x4, scoped, tag = 'scoped memory for mlp_bottleneck_classifier.1']
    #allocation8 [shape = 'u8[131072]{0}', space=vmem, size = 0x20000, scoped, tag = 'input window, operand 3, single buffered']
    #allocation9 [shape = 'u8[131072]{0}', space=vmem, size = 0x20000, scoped, tag = 'input window, operand 5, single buffered']
    #allocation10 [shape = 's32[1]{0}', space=sflag, size = 0x4, scoped, tag = 'scoped memory for mlp_bottleneck_classifier.1']
    #allocation11 [shape = 'u8[4096]{0}', space=vmem, size = 0x1000, scoped, tag = 'output window, operand 0, single buffered']
    #allocation12 [shape = 'u8[8192]{0}', space=vmem, size = 0x2000, scoped, tag = 'output window, operand 1, single buffered']
    #allocation13 [shape = 's32[1]{0}', space=sflag, size = 0x4, scoped, tag = 'scoped memory for mlp_bottleneck_classifier.1']
    %13 = vsyncpa [#allocation4], 0
    %14 = vsyncpa [#allocation7], 0
    %15 = vsyncpa [#allocation10], 0
    %16 = vsyncpa [#allocation5], 0
    %17 = vsyncpa [#allocation13], 0
    // Predicated region
    $region2: #{mlp_bottleneck_classifier.1} parent=1 // pred_check
      _
    $region3: #{mlp_bottleneck_classifier.1} parent=1 // pred_check_branch
      %19 = sbr.rel (0) target = $region5
    $region4: #{mlp_bottleneck_classifier.1} parent=1 // pred_region
      %s21 = ssub.s32 128, 128
      %22 = vsyncadd [#allocation4], %s21
      %s24 = sshll.u32 [#allocation3], 4
      %s25 = int_to_ptr.vmem [resolvable:$true] %s24
      %27 = dma.hbm_to_vmem [thread:$0]  %s0, 128, %s25, [#allocation4]
    $region5: #{mlp_bottleneck_classifier.1} parent=1 // pred_fallthru
      _
    // Predicated region
    $region6: #{mlp_bottleneck_classifier.1} parent=1 // pred_check
      _
    $region7: #{mlp_bottleneck_classifier.1} parent=1 // pred_check_branch
      %29 = sbr.rel (0) target = $region9
    $region8: #{mlp_bottleneck_classifier.1} parent=1 // pred_region
      %s31 = ssub.s32 512, 512
      %32 = vsyncadd [#allocation7], %s31
      %s33 = sshll.u32 [#allocation6], 4
      %s34 = int_to_ptr.vmem [resolvable:$true] %s33
      %39 = dma.hbm_to_vmem [thread:$0]  %s1, 512, %s34, [#allocation7], 128, 128, 8
    $region9: #{mlp_bottleneck_classifier.1} parent=1 // pred_fallthru
      _
    // Predicated region
    $region10: #{mlp_bottleneck_classifier.1} parent=1 // pred_check
      _
    $region11: #{mlp_bottleneck_classifier.1} parent=1 // pred_check_branch
      %41 = sbr.rel (0) target = $region13
    $region12: #{mlp_bottleneck_classifier.1} parent=1 // pred_region
      _
    $region13: #{mlp_bottleneck_classifier.1} parent=1 // pred_fallthru
      _
    // Predicated region
    $region14: #{mlp_bottleneck_classifier.1} parent=1 // pred_check
      _
    $region15: #{mlp_bottleneck_classifier.1} parent=1 // pred_check_branch
      %43 = sbr.rel (0) target = $region17
    $region16: #{mlp_bottleneck_classifier.1} parent=1 // pred_region
      %s45 = ssub.s32 4096, 4096
      %46 = vsyncadd [#allocation7], %s45
      %s47 = sshll.u32 [#allocation8], 4
      %s48 = int_to_ptr.vmem [resolvable:$true] %s47
      %53 = dma.hbm_to_vmem [thread:$0]  %s3, 4096, %s48, [#allocation7], 256, 256, 16
    $region17: #{mlp_bottleneck_classifier.1} parent=1 // pred_fallthru
      _
    // Predicated region
    $region18: #{mlp_bottleneck_classifier.1} parent=1 // pred_check
      _
    $region19: #{mlp_bottleneck_classifier.1} parent=1 // pred_check_branch
      %55 = sbr.rel (0) target = $region21
    $region20: #{mlp_bottleneck_classifier.1} parent=1 // pred_region
      _
    $region21: #{mlp_bottleneck_classifier.1} parent=1 // pred_fallthru
      _
    // Predicated region
    $region22: #{mlp_bottleneck_classifier.1} parent=1 // pred_check
      _
    $region23: #{mlp_bottleneck_classifier.1} parent=1 // pred_check_branch
      %57 = sbr.rel (0) target = $region25
    $region24: #{mlp_bottleneck_classifier.1} parent=1 // pred_region
      %s59 = ssub.s32 4096, 4096
      %60 = vsyncadd [#allocation10], %s59
      %s61 = sshll.u32 [#allocation9], 4
      %s62 = int_to_ptr.vmem [resolvable:$true] %s61
      %67 = dma.hbm_to_vmem [thread:$0]  %s5, 4096, %s62, [#allocation10], 128, 128, 8
    $region25: #{mlp_bottleneck_classifier.1} parent=1 // pred_fallthru
      _
    // Predicated region
    $region26: #{mlp_bottleneck_classifier.1} parent=1 // pred_check
      _
    $region27: #{mlp_bottleneck_classifier.1} parent=1 // pred_check_branch
      %69 = sbr.rel (0) target = $region29
    $region28: #{mlp_bottleneck_classifier.1} parent=1 // pred_region
      %70 = dma.done [#allocation4], 128
    $region29: #{mlp_bottleneck_classifier.1} parent=1 // pred_fallthru
      _
    // Predicated region
    $region30: #{mlp_bottleneck_classifier.1} parent=1 // pred_check
      _
    $region31: #{mlp_bottleneck_classifier.1} parent=1 // pred_check_branch
      %72 = sbr.rel (0) target = $region33
    $region32: #{mlp_bottleneck_classifier.1} parent=1 // pred_region
      %73 = dma.done [#allocation7], 512
    $region33: #{mlp_bottleneck_classifier.1} parent=1 // pred_fallthru
      _
    // Predicated region
    $region34: #{mlp_bottleneck_classifier.1} parent=1 // pred_check
      _
    $region35: #{mlp_bottleneck_classifier.1} parent=1 // pred_check_branch
      %75 = sbr.rel (0) target = $region37
    $region36: #{mlp_bottleneck_classifier.1} parent=1 // pred_region
      %76 = dma.done [#allocation7], 4096
    $region37: #{mlp_bottleneck_classifier.1} parent=1 // pred_fallthru
      _
    // Predicated region
    $region38: #{mlp_bottleneck_classifier.1} parent=1 // pred_check
      _
    $region39: #{mlp_bottleneck_classifier.1} parent=1 // pred_check_branch
      %78 = sbr.rel (0) target = $region41
    $region40: #{mlp_bottleneck_classifier.1} parent=1 // pred_region
      %79 = dma.done [#allocation10], 4096
    $region41: #{mlp_bottleneck_classifier.1} parent=1 // pred_fallthru
      _
    %p80 = scmp.eq.s32.totalorder 0, 0
    // Predicated region
    $region42: #{mlp_bottleneck_classifier.1} parent=1 // pred_check
      %p81 = pneg %p80
    $region43: #{mlp_bottleneck_classifier.1} parent=1 // pred_check_branch
      %83 = sbr.rel (%p81) target = $region45
    $region44: #{mlp_bottleneck_classifier.1} parent=1 // pred_region
      %v84 = vld [vmem:[#allocation3] sm:$0xff]
      %v85 = vld [vmem:[#allocation6] sm:$0xff]
      %v86 = vld [vmem:[#allocation6 + $0x8] sm:$0xff]
      %v87 = vld [vmem:[#allocation6 + $0x10] sm:$0xff]
      %v88 = vld [vmem:[#allocation6 + $0x18] sm:$0xff]
      %v89 = vld [vmem:[%s2] sm:$0x1]
      %v91 = vlaneseq
      %v92 = vshrl.u32 %v91, 7
      %v93 = vsub.s32 0, %v92
      %v94 = vrot.slane %v89, %v93
      %vm96 = vcmask 261120
      %v98 = vsel %vm96, %v84, 0
      %100 = vmatprep.subr.mxu0 0.0
      %101 = vmatpush1.msra.mxu0 %v85
      %102 = vmatprep.subr.mxu0 0.0
      %103 = vmatpush1.msra.mxu0 %v86
      %104 = vmatprep.subr.mxu0 0.0
      %105 = vmatpush1.msra.mxu0 %v87
      %106 = vmatprep.subr.mxu0 0.0
      %107 = vmatpush1.msra.mxu0 %v88
      %108 = vmatprep.subr.mxu0 0.0
      %109 = vmatpush1.msra.mxu0 0.0
      %110 = vmatprep.subr.mxu0 0.0
      %111 = vmatpush1.msra.mxu0 0.0
      %112 = vmatprep.subr.mxu0 0.0
      %113 = vmatpush1.msra.mxu0 0.0
      %114 = vmatprep.subr.mxu0 0.0
      %115 = vmatpush1.msra.mxu0 0.0
      %116 = vmatprep.subr.mxu0 0.0
      %117 = vmatpush1.msra.mxu0 0.0
      %118 = vmatprep.subr.mxu0 0.0
      %119 = vmatpush1.msra.mxu0 0.0
      %120 = vmatprep.subr.mxu0 0.0
      %121 = vmatpush1.msra.mxu0 0.0
      %122 = vmatprep.subr.mxu0 0.0
      %123 = vmatpush1.msra.mxu0 0.0
      %124 = vmatprep.subr.mxu0 0.0
      %125 = vmatpush1.msra.mxu0 0.0
      %126 = vmatprep.subr.mxu0 0.0
      %127 = vmatpush1.msra.mxu0 0.0
      %128 = vmatprep.subr.mxu0 0.0
      %129 = vmatpush1.msra.mxu0 0.0
      %130 = vmatprep.subr.mxu0 0.0
      %131 = vmatpush1.msra.mxu0 0.0
      %132 = vmatprep.subr.mxu0 0.0
      %133 = vmatpush1.msra.mxu0 0.0
      %134 = vmatprep.subr.mxu0 0.0
      %135 = vmatpush1.msra.mxu0 0.0
      %136 = vmatprep.subr.mxu0 0.0
      %137 = vmatpush1.msra.mxu0 0.0
      %138 = vmatprep.subr.mxu0 0.0
      %139 = vmatpush1.msra.mxu0 0.0
      %140 = vmatprep.subr.mxu0 0.0
      %141 = vmatpush1.msra.mxu0 0.0
      %142 = vmatprep.subr.mxu0 0.0
      %143 = vmatpush1.msra.mxu0 0.0
      %144 = vmatprep.subr.mxu0 0.0
      %145 = vmatpush1.msra.mxu0 0.0
      %146 = vmatprep.subr.mxu0 0.0
      %147 = vmatpush1.msra.mxu0 0.0
      %148 = vmatprep.subr.mxu0 0.0
      %149 = vmatpush1.msra.mxu0 0.0
      %150 = vmatprep.subr.mxu0 0.0
      %151 = vmatpush1.msra.mxu0 0.0
      %152 = vmatprep.subr.mxu0 0.0
      %153 = vmatpush1.msra.mxu0 0.0
      %154 = vmatprep.subr.mxu0 0.0
      %155 = vmatpush1.msra.mxu0 0.0
      %156 = vmatprep.subr.mxu0 0.0
      %157 = vmatpush1.msra.mxu0 0.0
      %158 = vmatprep.subr.mxu0 0.0
      %159 = vmatpush1.msra.mxu0 0.0
      %160 = vmatprep.subr.mxu0 0.0
      %161 = vmatpush1.msra.mxu0 0.0
      %162 = vmatprep.subr.mxu0 0.0
      %163 = vmatpush1.msra.mxu0 0.0
      %164 = vmatprep.mubr.f32.mxu0 0.0
      %165 = vmatmul.mubr.f32.gmra.mrb[0].mxu0 %v98
      %v166 = vpop.f32.mrb[0].mxu0
      %v167 = vadd.f32 %v94, %v166
      %v168 = vpop.f32.mrb[0].mxu0
      %169 = vdwg.mxu0
      %v170 = vmax.f32 %v167, 0.0
      %v171 = vld [vmem:[#allocation8] sm:$0xff]
      %v172 = vld [vmem:[#allocation8 + $0x8] sm:$0xff]
      %v173 = vld [vmem:[#allocation8 + $0x10] sm:$0xff]
      %v174 = vld [vmem:[#allocation8 + $0x18] sm:$0xff]
      %v175 = vld [vmem:[#allocation8 + $0x20] sm:$0xff]
      %v176 = vld [vmem:[#allocation8 + $0x28] sm:$0xff]
      %v177 = vld [vmem:[#allocation8 + $0x30] sm:$0xff]
      %v178 = vld [vmem:[#allocation8 + $0x38] sm:$0xff]
      %v179 = vld [vmem:[#allocation8 + $0x40] sm:$0xff]
      %v180 = vld [vmem:[#allocation8 + $0x48] sm:$0xff]
      %v181 = vld [vmem:[#allocation8 + $0x50] sm:$0xff]
      %v182 = vld [vmem:[#allocation8 + $0x58] sm:$0xff]
      %v183 = vld [vmem:[#allocation8 + $0x60] sm:$0xff]
      %v184 = vld [vmem:[#allocation8 + $0x68] sm:$0xff]
      %v185 = vld [vmem:[#allocation8 + $0x70] sm:$0xff]
      %v186 = vld [vmem:[#allocation8 + $0x78] sm:$0xff]
      %v187 = vld [vmem:[#allocation8 + $0x80] sm:$0xff]
      %v188 = vld [vmem:[#allocation8 + $0x88] sm:$0xff]
      %v189 = vld [vmem:[#allocation8 + $0x90] sm:$0xff]
      %v190 = vld [vmem:[#allocation8 + $0x98] sm:$0xff]
      %v191 = vld [vmem:[#allocation8 + $0xa0] sm:$0xff]
      %v192 = vld [vmem:[#allocation8 + $0xa8] sm:$0xff]
      %v193 = vld [vmem:[#allocation8 + $0xb0] sm:$0xff]
      %v194 = vld [vmem:[#allocation8 + $0xb8] sm:$0xff]
      %v195 = vld [vmem:[#allocation8 + $0xc0] sm:$0xff]
      %v196 = vld [vmem:[#allocation8 + $0xc8] sm:$0xff]
      %v197 = vld [vmem:[#allocation8 + $0xd0] sm:$0xff]
      %v198 = vld [vmem:[#allocation8 + $0xd8] sm:$0xff]
      %v199 = vld [vmem:[#allocation8 + $0xe0] sm:$0xff]
      %v200 = vld [vmem:[#allocation8 + $0xe8] sm:$0xff]
      %v201 = vld [vmem:[#allocation8 + $0xf0] sm:$0xff]
      %v202 = vld [vmem:[#allocation8 + $0xf8] sm:$0xff]
      %v203 = vld [vmem:[%s4] sm:$0x3]
      %v205 = vlaneseq
      %v206 = vshrl.u32 %v205, 7
      %v207 = vsub.s32 0, %v206
      %v208 = vrot.slane %v203, %v207
      %v209 = vlaneseq
      %v210 = vshrl.u32 %v209, 7
      %v211 = vsub.s32 1, %v210
      %v212 = vrot.slane %v203, %v211
      %215 = vmatprep.subr.mxu0 %v172
      %216 = vmatpush1.msra.mxu0 %v171
      %217 = vmatprep.subr.mxu0 %v174
      %218 = vmatpush1.msra.mxu0 %v173
      %219 = vmatprep.subr.mxu0 %v176
      %220 = vmatpush1.msra.mxu0 %v175
      %221 = vmatprep.subr.mxu0 %v178
      %222 = vmatpush1.msra.mxu0 %v177
      %223 = vmatprep.subr.mxu0 %v180
      %224 = vmatpush1.msra.mxu0 %v179
      %225 = vmatprep.subr.mxu0 %v182
      %226 = vmatpush1.msra.mxu0 %v181
      %227 = vmatprep.subr.mxu0 %v184
      %228 = vmatpush1.msra.mxu0 %v183
      %229 = vmatprep.subr.mxu0 %v186
      %230 = vmatpush1.msra.mxu0 %v185
      %231 = vmatprep.subr.mxu0 %v188
      %232 = vmatpush1.msra.mxu0 %v187
      %233 = vmatprep.subr.mxu0 %v190
      %234 = vmatpush1.msra.mxu0 %v189
      %235 = vmatprep.subr.mxu0 %v192
      %236 = vmatpush1.msra.mxu0 %v191
      %237 = vmatprep.subr.mxu0 %v194
      %238 = vmatpush1.msra.mxu0 %v193
      %239 = vmatprep.subr.mxu0 %v196
      %240 = vmatpush1.msra.mxu0 %v195
      %241 = vmatprep.subr.mxu0 %v198
      %242 = vmatpush1.msra.mxu0 %v197
      %243 = vmatprep.subr.mxu0 %v200
      %244 = vmatpush1.msra.mxu0 %v199
      %245 = vmatprep.subr.mxu0 %v202
      %246 = vmatpush1.msra.mxu0 %v201
      %247 = vmatprep.subr.mxu0 0.0
      %248 = vmatpush1.msra.mxu0 0.0
      %249 = vmatprep.subr.mxu0 0.0
      %250 = vmatpush1.msra.mxu0 0.0
      %251 = vmatprep.subr.mxu0 0.0
      %252 = vmatpush1.msra.mxu0 0.0
      %253 = vmatprep.subr.mxu0 0.0
      %254 = vmatpush1.msra.mxu0 0.0
      %255 = vmatprep.subr.mxu0 0.0
      %256 = vmatpush1.msra.mxu0 0.0
      %257 = vmatprep.subr.mxu0 0.0
      %258 = vmatpush1.msra.mxu0 0.0
      %259 = vmatprep.subr.mxu0 0.0
      %260 = vmatpush1.msra.mxu0 0.0
      %261 = vmatprep.subr.mxu0 0.0
      %262 = vmatpush1.msra.mxu0 0.0
      %263 = vmatprep.subr.mxu0 0.0
      %264 = vmatpush1.msra.mxu0 0.0
      %265 = vmatprep.subr.mxu0 0.0
      %266 = vmatpush1.msra.mxu0 0.0
      %267 = vmatprep.subr.mxu0 0.0
      %268 = vmatpush1.msra.mxu0 0.0
      %269 = vmatprep.subr.mxu0 0.0
      %270 = vmatpush1.msra.mxu0 0.0
      %271 = vmatprep.subr.mxu0 0.0
      %272 = vmatpush1.msra.mxu0 0.0
      %273 = vmatprep.subr.mxu0 0.0
      %274 = vmatpush1.msra.mxu0 0.0
      %275 = vmatprep.subr.mxu0 0.0
      %276 = vmatpush1.msra.mxu0 0.0
      %277 = vmatprep.subr.mxu0 0.0
      %278 = vmatpush1.msra.mxu0 0.0
      %279 = vmatprep.mubr.f32.mxu0 0.0
      %280 = vmatmul.mubr.f32.gmra.mrb[0].mxu0 %v170
      %v281 = vpop.f32.mrb[0].mxu0
      %v282 = vadd.f32 %v208, %v281
      %v283 = vpop.f32.mrb[0].mxu0
      %v284 = vadd.f32 %v212, %v283
      %285 = vdwg.mxu0
      %v286 = vmul.f32 %v282, %v282
      %v287 = vmul.f32 %v284, %v284
      %v288 = vadd.f32 %v286, %v287
      %289 = vadd.xlane.f32.xlu0 %v288
      %v290 = vpop.xlane.xlu0 %289
      %v291 = vmax.f32 %v290, 1e-24
      %v292 = vrsqrt.pop %v291
      %v293 = vmul.f32 %v282, %v292
      %v294 = vmul.f32 %v284, %v292
      %295 = vst [vmem:[#allocation2] sm:$0xff] %v293
      %296 = vst [vmem:[#allocation2 + $0x8] sm:$0xff] %v294
      %297 = vst [vmem:[#allocation12] sm:$0xff] %v293
      %298 = vst [vmem:[#allocation12 + $0x8] sm:$0xff] %v294
    $region45: #{mlp_bottleneck_classifier.1} parent=1 // pred_fallthru
      _
    %v299 = vld [vmem:[#allocation2] sm:$0xff]
    %v300 = vld [vmem:[#allocation2 + $0x8] sm:$0xff]
    %v301 = vld [vmem:[#allocation9] sm:$0xff]
    %v302 = vld [vmem:[#allocation9 + $0x8] sm:$0xff]
    %v303 = vld [vmem:[#allocation9 + $0x10] sm:$0xff]
    %v304 = vld [vmem:[#allocation9 + $0x18] sm:$0xff]
    %v305 = vld [vmem:[#allocation9 + $0x20] sm:$0xff]
    %v306 = vld [vmem:[#allocation9 + $0x28] sm:$0xff]
    %v307 = vld [vmem:[#allocation9 + $0x30] sm:$0xff]
    %v308 = vld [vmem:[#allocation9 + $0x38] sm:$0xff]
    %v309 = vld [vmem:[#allocation9 + $0x40] sm:$0xff]
    %v310 = vld [vmem:[#allocation9 + $0x48] sm:$0xff]
    %v311 = vld [vmem:[#allocation9 + $0x50] sm:$0xff]
    %v312 = vld [vmem:[#allocation9 + $0x58] sm:$0xff]
    %v313 = vld [vmem:[#allocation9 + $0x60] sm:$0xff]
    %v314 = vld [vmem:[#allocation9 + $0x68] sm:$0xff]
    %v315 = vld [vmem:[#allocation9 + $0x70] sm:$0xff]
    %v316 = vld [vmem:[#allocation9 + $0x78] sm:$0xff]
    %v317 = vld [vmem:[#allocation9 + $0x80] sm:$0xff]
    %v318 = vld [vmem:[#allocation9 + $0x88] sm:$0xff]
    %v319 = vld [vmem:[#allocation9 + $0x90] sm:$0xff]
    %v320 = vld [vmem:[#allocation9 + $0x98] sm:$0xff]
    %v321 = vld [vmem:[#allocation9 + $0xa0] sm:$0xff]
    %v322 = vld [vmem:[#allocation9 + $0xa8] sm:$0xff]
    %v323 = vld [vmem:[#allocation9 + $0xb0] sm:$0xff]
    %v324 = vld [vmem:[#allocation9 + $0xb8] sm:$0xff]
    %v325 = vld [vmem:[#allocation9 + $0xc0] sm:$0xff]
    %v326 = vld [vmem:[#allocation9 + $0xc8] sm:$0xff]
    %v327 = vld [vmem:[#allocation9 + $0xd0] sm:$0xff]
    %v328 = vld [vmem:[#allocation9 + $0xd8] sm:$0xff]
    %v329 = vld [vmem:[#allocation9 + $0xe0] sm:$0xff]
    %v330 = vld [vmem:[#allocation9 + $0xe8] sm:$0xff]
    %v331 = vld [vmem:[#allocation9 + $0xf0] sm:$0xff]
    %v332 = vld [vmem:[#allocation9 + $0xf8] sm:$0xff]
    %333 = vmatprep.subr.mxu0 0.0
    %334 = vmatpush1.msra.mxu0 %v301
    %335 = vmatprep.subr.mxu0 0.0
    %336 = vmatpush1.msra.mxu0 %v302
    %337 = vmatprep.subr.mxu0 0.0
    %338 = vmatpush1.msra.mxu0 %v303
    %339 = vmatprep.subr.mxu0 0.0
    %340 = vmatpush1.msra.mxu0 %v304
    %341 = vmatprep.subr.mxu0 0.0
    %342 = vmatpush1.msra.mxu0 %v305
    %343 = vmatprep.subr.mxu0 0.0
    %344 = vmatpush1.msra.mxu0 %v306
    %345 = vmatprep.subr.mxu0 0.0
    %346 = vmatpush1.msra.mxu0 %v307
    %347 = vmatprep.subr.mxu0 0.0
    %348 = vmatpush1.msra.mxu0 %v308
    %349 = vmatprep.subr.mxu0 0.0
    %350 = vmatpush1.msra.mxu0 %v309
    %351 = vmatprep.subr.mxu0 0.0
    %352 = vmatpush1.msra.mxu0 %v310
    %353 = vmatprep.subr.mxu0 0.0
    %354 = vmatpush1.msra.mxu0 %v311
    %355 = vmatprep.subr.mxu0 0.0
    %356 = vmatpush1.msra.mxu0 %v312
    %357 = vmatprep.subr.mxu0 0.0
    %358 = vmatpush1.msra.mxu0 %v313
    %359 = vmatprep.subr.mxu0 0.0
    %360 = vmatpush1.msra.mxu0 %v314
    %361 = vmatprep.subr.mxu0 0.0
    %362 = vmatpush1.msra.mxu0 %v315
    %363 = vmatprep.subr.mxu0 0.0
    %364 = vmatpush1.msra.mxu0 %v316
    %365 = vmatprep.subr.mxu0 0.0
    %366 = vmatpush1.msra.mxu0 %v317
    %367 = vmatprep.subr.mxu0 0.0
    %368 = vmatpush1.msra.mxu0 %v318
    %369 = vmatprep.subr.mxu0 0.0
    %370 = vmatpush1.msra.mxu0 %v319
    %371 = vmatprep.subr.mxu0 0.0
    %372 = vmatpush1.msra.mxu0 %v320
    %373 = vmatprep.subr.mxu0 0.0
    %374 = vmatpush1.msra.mxu0 %v321
    %375 = vmatprep.subr.mxu0 0.0
    %376 = vmatpush1.msra.mxu0 %v322
    %377 = vmatprep.subr.mxu0 0.0
    %378 = vmatpush1.msra.mxu0 %v323
    %379 = vmatprep.subr.mxu0 0.0
    %380 = vmatpush1.msra.mxu0 %v324
    %381 = vmatprep.subr.mxu0 0.0
    %382 = vmatpush1.msra.mxu0 %v325
    %383 = vmatprep.subr.mxu0 0.0
    %384 = vmatpush1.msra.mxu0 %v326
    %385 = vmatprep.subr.mxu0 0.0
    %386 = vmatpush1.msra.mxu0 %v327
    %387 = vmatprep.subr.mxu0 0.0
    %388 = vmatpush1.msra.mxu0 %v328
    %389 = vmatprep.subr.mxu0 0.0
    %390 = vmatpush1.msra.mxu0 %v329
    %391 = vmatprep.subr.mxu0 0.0
    %392 = vmatpush1.msra.mxu0 %v330
    %393 = vmatprep.subr.mxu0 0.0
    %394 = vmatpush1.msra.mxu0 %v331
    %395 = vmatprep.subr.mxu0 0.0
    %396 = vmatpush1.msra.mxu0 %v332
    %397 = vmatprep.mubr.f32.mxu0 %v300
    %398 = vmatmul.mubr.f32.gmra.mrb[0].mxu0 %v299
    %v399 = vpop.f32.mrb[0].mxu0
    %v400 = vadd.f32 0.0, %v399
    %v401 = vpop.f32.mrb[0].mxu0
    %402 = vdwg.mxu0
    %403 = vst [vmem:[#allocation11] sm:$0xff] %v400
    // Predicated region
    $region46: #{mlp_bottleneck_classifier.1} parent=1 // pred_check
      _
    $region47: #{mlp_bottleneck_classifier.1} parent=1 // pred_check_branch
      %405 = sbr.rel (0) target = $region49
    $region48: #{mlp_bottleneck_classifier.1} parent=1 // pred_region
      %s407 = ssub.s32 128, 128
      %408 = vsyncadd [#allocation5], %s407
      %s410 = sshll.u32 [#allocation11], 4
      %s411 = int_to_ptr.vmem [resolvable:$true] %s410
      %413 = dma.vmem_to_hbm [thread:$0]  %s411, 128, %s6, [#allocation5]
    $region49: #{mlp_bottleneck_classifier.1} parent=1 // pred_fallthru
      _
    // Predicated region
    $region50: #{mlp_bottleneck_classifier.1} parent=1 // pred_check
      _
    $region51: #{mlp_bottleneck_classifier.1} parent=1 // pred_check_branch
      %415 = sbr.rel (0) target = $region53
    $region52: #{mlp_bottleneck_classifier.1} parent=1 // pred_region
      %s417 = ssub.s32 256, 256
      %418 = vsyncadd [#allocation13], %s417
      %s420 = sshll.u32 [#allocation12], 4
      %s421 = int_to_ptr.vmem [resolvable:$true] %s420
      %423 = dma.vmem_to_hbm [thread:$0]  %s421, 256, %s7, [#allocation13]
    $region53: #{mlp_bottleneck_classifier.1} parent=1 // pred_fallthru
      _
    // Predicated region
    $region54: #{mlp_bottleneck_classifier.1} parent=1 // pred_check
      _
    $region55: #{mlp_bottleneck_classifier.1} parent=1 // pred_check_branch
      %425 = sbr.rel (0) target = $region57
    $region56: #{mlp_bottleneck_classifier.1} parent=1 // pred_region
      %426 = dma.done [#allocation5], 128
    $region57: #{mlp_bottleneck_classifier.1} parent=1 // pred_fallthru
      _
    // Predicated region
    $region58: #{mlp_bottleneck_classifier.1} parent=1 // pred_check
      _
    $region59: #{mlp_bottleneck_classifier.1} parent=1 // pred_check_branch
      %428 = sbr.rel (0) target = $region61
    $region60: #{mlp_bottleneck_classifier.1} parent=1 // pred_region
      %429 = dma.done [#allocation13], 256
    $region61: #{mlp_bottleneck_classifier.1} parent=1 // pred_fallthru
      _
    %430 = vsyncpa [#allocation4], 1
    %431 = vsyncpa [#allocation7], 1
    %432 = vsyncpa [#allocation10], 1
    %433 = vsyncpa [#allocation5], 1
    %434 = vsyncpa [#allocation13], 1

</llo_original>
